<compile_context>
chip_gen: v5e
topology: v5e:2x2
jax: 0.10.0
libtpu: 0.0.40
codegen_flags: <defaults>
</compile_context>

<pallas_src>
import jax
import jax.numpy as jnp
from jax.experimental import pallas as pl
from jax.experimental.pallas import tpu as pltpu

# ---- problem sizes (small, consistent with the module's (N, h) contract) ----
N = 16        # batch of queries
L = 8         # sequence length
H_IN = 32     # encoder input (token embedding) width
H = 32        # encoder hidden width

MINER_MARGIN = 0.2
MS_ALPHA = 1.0
MS_BETA = 60.0
MS_BASE = 0.5


# ------------------------------------------------------------------
# Fused kernel:
#   cls_ref : (N, H_IN) f32  -- CLS-token inputs only (VMEM)
#   w_ref   : (H_IN, H) f32  -- stand-in encoder weight (VMEM)
#   b_ref   : (1, H)    f32  -- stand-in encoder bias   (VMEM)
#   lab_ref : (N,)      i32  -- labels (SMEM)
#   loss_ref: (1,)      f32  -- scalar loss (SMEM)
# ------------------------------------------------------------------
def sap_fused_kernel(cls_ref, w_ref, b_ref, lab_ref, loss_ref):
    # ---- stand-in encoder on CLS rows only: (N, H_IN) @ (H_IN, H) + (1, H) ----
    x = jnp.dot(cls_ref[...], w_ref[...],
                preferred_element_type=jnp.float32) + b_ref[...]        # (N, H)

    # ---- L2-normalize (rsqrt -> EUP, multiply -> single vmul) ----
    inv = jax.lax.rsqrt(jnp.sum(x * x, axis=-1, keepdims=True) + 1e-24)
    xn = x * inv                                                        # (N, H)

    # ---- cosine similarities, contracting both last dims (no explicit transpose) ----
    sim = jax.lax.dot_general(xn, xn,
                              dimension_numbers=(((1,), (1,)), ((), ())),
                              preferred_element_type=jnp.float32)       # (N, N)
    # normalized L2 distances used by the miner
    dist = jnp.sqrt(jnp.maximum(2.0 - 2.0 * sim, 0.0))                  # (N, N)

    n = sim.shape[0]
    row_id = jax.lax.broadcasted_iota(jnp.int32, (n, n), 0)
    col_id = jax.lax.broadcasted_iota(jnp.int32, (n, n), 1)
    diag = row_id == col_id

    # Build (n, n) label grids from SMEM scalars (static unrolled; n is small).
    row_lab = jnp.zeros((n, n), jnp.int32)                              # row_lab[i, j] = lab[i]
    col_lab = jnp.zeros((n, n), jnp.int32)                              # col_lab[i, j] = lab[j]
    for i in range(n):
        li = lab_ref[i]
        row_lab = jnp.where(row_id == i, li, row_lab)
        col_lab = jnp.where(col_id == i, li, col_lab)
    same = row_lab == col_lab                                           # (N, N) bool

    pos_pair = jnp.logical_and(same, jnp.logical_not(diag))             # valid (a, p)
    neg_pair = jnp.logical_not(same)                                    # valid (a, n)

    big = jnp.float32(1e30)
    min_neg = jnp.min(jnp.where(neg_pair, dist, big), axis=-1, keepdims=True)
    max_pos = jnp.max(jnp.where(pos_pair, dist, -big), axis=-1, keepdims=True)
    has_neg = jnp.sum(jnp.where(neg_pair, 1.0, 0.0), axis=-1, keepdims=True) > 0.0
    has_pos = jnp.sum(jnp.where(pos_pair, 1.0, 0.0), axis=-1, keepdims=True) > 0.0

    # TripletMarginMiner(type_of_triplets='all') keeps (a,p,n) with d(a,n) <= d(a,p) + margin.
    # convert_to_pairs(mined triplets) ->
    #   pos_mask[a,p] = pos_pair & exists n: d(a,n) <= d(a,p) + margin
    #   neg_mask[a,n] = neg_pair & exists p: d(a,n) <= d(a,p) + margin
    pos_mask = jnp.logical_and(jnp.logical_and(pos_pair, has_neg),
                               min_neg <= dist + MINER_MARGIN)
    neg_mask = jnp.logical_and(jnp.logical_and(neg_pair, has_pos),
                               dist <= max_pos + MINER_MARGIN)

    # MultiSimilarityLoss(alpha=1, beta=60, base=0.5) on cosine similarities:
    #   pos_loss = (1/alpha) log(1 + sum_{pos} exp(alpha*(base - s)))
    #   neg_loss = (1/beta)  log(1 + sum_{neg} exp(beta *(s - base)))
    pos_sum = jnp.sum(jnp.where(pos_mask, jnp.exp(MS_ALPHA * (MS_BASE - sim)), 0.0),
                      axis=-1, keepdims=True)
    neg_sum = jnp.sum(jnp.where(neg_mask, jnp.exp(MS_BETA * (sim - MS_BASE)), 0.0),
                      axis=-1, keepdims=True)
    per_anchor = (1.0 / MS_ALPHA) * jnp.log(1.0 + pos_sum) \
               + (1.0 / MS_BETA) * jnp.log(1.0 + neg_sum)               # (N, 1)

    # MeanReducer over all N anchors -> scalar in SMEM.
    loss_ref[0] = jnp.sum(per_anchor) / jnp.float32(n)


# ------------------------------------------------------------------
# Wrapper: mirrors Sap_Metric_Learning.forward(query_toks, labels) -> scalar loss
# ------------------------------------------------------------------
@jax.jit
def sap_metric_learning_forward(query_tok_embeds, labels, enc_w, enc_b):
    # agg_mode == 'cls': only the CLS token rows are ever used, so only they are encoded.
    cls_tokens = query_tok_embeds[:, 0, :].astype(jnp.float32)          # (N, H_IN)
    labels_i32 = labels.astype(jnp.int32)                               # (N,)

    loss = pl.pallas_call(
        sap_fused_kernel,
        out_shape=jax.ShapeDtypeStruct((1,), jnp.float32),
        in_specs=[
            pl.BlockSpec(memory_space=pltpu.MemorySpace.VMEM),   # cls tokens (N, H_IN)
            pl.BlockSpec(memory_space=pltpu.MemorySpace.VMEM),   # enc_w (H_IN, H)
            pl.BlockSpec(memory_space=pltpu.MemorySpace.VMEM),   # enc_b (1, H)
            pl.BlockSpec(memory_space=pltpu.MemorySpace.SMEM),   # labels (N,)
        ],
        out_specs=pl.BlockSpec(memory_space=pltpu.MemorySpace.SMEM),
    )(cls_tokens, enc_w, enc_b, labels_i32)
    return loss[0]


if __name__ == "__main__":
    key = jax.random.PRNGKey(0)
    k_x, k_w, k_b = jax.random.split(key, 3)

    # Deterministic "tokenized query" embeddings and stand-in encoder parameters.
    query_tok_embeds = jax.random.normal(k_x, (N, L, H_IN), dtype=jnp.float32)
    enc_w = jax.random.normal(k_w, (H_IN, H), dtype=jnp.float32) * 0.1
    enc_b = jax.random.normal(k_b, (1, H), dtype=jnp.float32) * 0.01

    # Labels with repeats so that both positives and negatives exist.
    labels = jnp.arange(N, dtype=jnp.int32) % 4

    loss = sap_metric_learning_forward(query_tok_embeds, labels, enc_w, enc_b)
    jax.block_until_ready(loss)
    print("KERNEL_OK")
</pallas_src>

<mosaic_0001>
module attributes {stable_mosaic.version = 11 : i64} {
  func.func @sap_fused_kernel(%arg0: memref<16x32xf32, #tpu.memory_space<vmem>>, %arg1: memref<32x32xf32, #tpu.memory_space<vmem>>, %arg2: memref<1x32xf32, #tpu.memory_space<vmem>>, %arg3: memref<16xi32, #tpu.memory_space<smem>>, %arg4: memref<1xf32, #tpu.memory_space<smem>>) attributes {dimension_semantics = [], scalar_prefetch = 0 : i64, scratch_operands = 0 : i64, tpu.core_type = #tpu.core_type<tc>} {
    %c0 = arith.constant 0 : index
    %c0_0 = arith.constant 0 : index
    %0 = vector.load %arg0[%c0, %c0_0] : memref<16x32xf32, #tpu.memory_space<vmem>>, vector<16x32xf32>
    %c0_1 = arith.constant 0 : index
    %c0_2 = arith.constant 0 : index
    %1 = vector.load %arg1[%c0_1, %c0_2] : memref<32x32xf32, #tpu.memory_space<vmem>>, vector<32x32xf32>
    %cst = arith.constant dense<0.000000e+00> : vector<16x32xf32>
    %2 = tpu.matmul %0, %1, %cst {dimension_numbers = #tpu.dot_dimension_numbers<[1], [0], [0], [1], [0, 0, 1, 1], [], []>} : vector<16x32xf32>, vector<32x32xf32>, vector<16x32xf32> -> vector<16x32xf32>
    %c0_3 = arith.constant 0 : index
    %c0_4 = arith.constant 0 : index
    %3 = vector.load %arg2[%c0_3, %c0_4] : memref<1x32xf32, #tpu.memory_space<vmem>>, vector<1x32xf32>
    %4 = vector.broadcast %3 : vector<1x32xf32> to vector<16x32xf32>
    %5 = arith.addf %2, %4 : vector<16x32xf32>
    %6 = arith.mulf %5, %5 : vector<16x32xf32>
    %cst_5 = arith.constant dense<0.000000e+00> : vector<16xf32>
    %7 = vector.multi_reduction <add>, %6, %cst_5 [1] : vector<16x32xf32> to vector<16xf32>
    %8 = vector.shape_cast %7 : vector<16xf32> to vector<16x1xf32>
    %cst_6 = arith.constant 1.000000e-24 : f32
    %9 = vector.broadcast %cst_6 : f32 to vector<16x1xf32>
    %10 = arith.addf %8, %9 : vector<16x1xf32>
    %11 = math.rsqrt %10 : vector<16x1xf32>
    %12 = vector.broadcast %11 : vector<16x1xf32> to vector<16x32xf32>
    %13 = arith.mulf %5, %12 : vector<16x32xf32>
    %cst_7 = arith.constant dense<0.000000e+00> : vector<16x16xf32>
    %14 = tpu.matmul %13, %13, %cst_7 {dimension_numbers = #tpu.dot_dimension_numbers<[1], [1], [0], [0], [0, 0, 1, 0], [], []>} : vector<16x32xf32>, vector<16x32xf32>, vector<16x16xf32> -> vector<16x16xf32>
    %cst_8 = arith.constant 2.000000e+00 : f32
    %15 = vector.broadcast %cst_8 : f32 to vector<16x16xf32>
    %16 = arith.mulf %15, %14 : vector<16x16xf32>
    %cst_9 = arith.constant 2.000000e+00 : f32
    %17 = vector.broadcast %cst_9 : f32 to vector<16x16xf32>
    %18 = arith.subf %17, %16 : vector<16x16xf32>
    %cst_10 = arith.constant 0.000000e+00 : f32
    %19 = vector.broadcast %cst_10 : f32 to vector<16x16xf32>
    %20 = arith.maximumf %18, %19 : vector<16x16xf32>
    %21 = math.sqrt %20 : vector<16x16xf32>
    %22 = tpu.iota {dimensions = array<i32: 0>} : vector<16x16xi32>
    %23 = tpu.iota {dimensions = array<i32: 1>} : vector<16x16xi32>
    %24 = arith.cmpi eq, %22, %23 : vector<16x16xi32>
    %c0_i32 = arith.constant 0 : i32
    %25 = vector.broadcast %c0_i32 : i32 to vector<16x16xi32>
    %c0_i32_11 = arith.constant 0 : i32
    %26 = vector.broadcast %c0_i32_11 : i32 to vector<16x16xi32>
    %c0_12 = arith.constant 0 : index
    %27 = memref.load %arg3[%c0_12] : memref<16xi32, #tpu.memory_space<smem>>
    %c0_i32_13 = arith.constant 0 : i32
    %28 = vector.broadcast %c0_i32_13 : i32 to vector<16x16xi32>
    %29 = arith.cmpi eq, %22, %28 : vector<16x16xi32>
    %30 = vector.broadcast %27 : i32 to vector<16x16xi32>
    %31 = arith.select %29, %30, %25 : vector<16x16xi1>, vector<16x16xi32>
    %c0_i32_14 = arith.constant 0 : i32
    %32 = vector.broadcast %c0_i32_14 : i32 to vector<16x16xi32>
    %33 = arith.cmpi eq, %23, %32 : vector<16x16xi32>
    %34 = vector.broadcast %27 : i32 to vector<16x16xi32>
    %35 = arith.select %33, %34, %26 : vector<16x16xi1>, vector<16x16xi32>
    %c1 = arith.constant 1 : index
    %36 = memref.load %arg3[%c1] : memref<16xi32, #tpu.memory_space<smem>>
    %c1_i32 = arith.constant 1 : i32
    %37 = vector.broadcast %c1_i32 : i32 to vector<16x16xi32>
    %38 = arith.cmpi eq, %22, %37 : vector<16x16xi32>
    %39 = vector.broadcast %36 : i32 to vector<16x16xi32>
    %40 = arith.select %38, %39, %31 : vector<16x16xi1>, vector<16x16xi32>
    %c1_i32_15 = arith.constant 1 : i32
    %41 = vector.broadcast %c1_i32_15 : i32 to vector<16x16xi32>
    %42 = arith.cmpi eq, %23, %41 : vector<16x16xi32>
    %43 = vector.broadcast %36 : i32 to vector<16x16xi32>
    %44 = arith.select %42, %43, %35 : vector<16x16xi1>, vector<16x16xi32>
    %c2 = arith.constant 2 : index
    %45 = memref.load %arg3[%c2] : memref<16xi32, #tpu.memory_space<smem>>
    %c2_i32 = arith.constant 2 : i32
    %46 = vector.broadcast %c2_i32 : i32 to vector<16x16xi32>
    %47 = arith.cmpi eq, %22, %46 : vector<16x16xi32>
    %48 = vector.broadcast %45 : i32 to vector<16x16xi32>
    %49 = arith.select %47, %48, %40 : vector<16x16xi1>, vector<16x16xi32>
    %c2_i32_16 = arith.constant 2 : i32
    %50 = vector.broadcast %c2_i32_16 : i32 to vector<16x16xi32>
    %51 = arith.cmpi eq, %23, %50 : vector<16x16xi32>
    %52 = vector.broadcast %45 : i32 to vector<16x16xi32>
    %53 = arith.select %51, %52, %44 : vector<16x16xi1>, vector<16x16xi32>
    %c3 = arith.constant 3 : index
    %54 = memref.load %arg3[%c3] : memref<16xi32, #tpu.memory_space<smem>>
    %c3_i32 = arith.constant 3 : i32
    %55 = vector.broadcast %c3_i32 : i32 to vector<16x16xi32>
    %56 = arith.cmpi eq, %22, %55 : vector<16x16xi32>
    %57 = vector.broadcast %54 : i32 to vector<16x16xi32>
    %58 = arith.select %56, %57, %49 : vector<16x16xi1>, vector<16x16xi32>
    %c3_i32_17 = arith.constant 3 : i32
    %59 = vector.broadcast %c3_i32_17 : i32 to vector<16x16xi32>
    %60 = arith.cmpi eq, %23, %59 : vector<16x16xi32>
    %61 = vector.broadcast %54 : i32 to vector<16x16xi32>
    %62 = arith.select %60, %61, %53 : vector<16x16xi1>, vector<16x16xi32>
    %c4 = arith.constant 4 : index
    %63 = memref.load %arg3[%c4] : memref<16xi32, #tpu.memory_space<smem>>
    %c4_i32 = arith.constant 4 : i32
    %64 = vector.broadcast %c4_i32 : i32 to vector<16x16xi32>
    %65 = arith.cmpi eq, %22, %64 : vector<16x16xi32>
    %66 = vector.broadcast %63 : i32 to vector<16x16xi32>
    %67 = arith.select %65, %66, %58 : vector<16x16xi1>, vector<16x16xi32>
    %c4_i32_18 = arith.constant 4 : i32
    %68 = vector.broadcast %c4_i32_18 : i32 to vector<16x16xi32>
    %69 = arith.cmpi eq, %23, %68 : vector<16x16xi32>
    %70 = vector.broadcast %63 : i32 to vector<16x16xi32>
    %71 = arith.select %69, %70, %62 : vector<16x16xi1>, vector<16x16xi32>
    %c5 = arith.constant 5 : index
    %72 = memref.load %arg3[%c5] : memref<16xi32, #tpu.memory_space<smem>>
    %c5_i32 = arith.constant 5 : i32
    %73 = vector.broadcast %c5_i32 : i32 to vector<16x16xi32>
    %74 = arith.cmpi eq, %22, %73 : vector<16x16xi32>
    %75 = vector.broadcast %72 : i32 to vector<16x16xi32>
    %76 = arith.select %74, %75, %67 : vector<16x16xi1>, vector<16x16xi32>
    %c5_i32_19 = arith.constant 5 : i32
    %77 = vector.broadcast %c5_i32_19 : i32 to vector<16x16xi32>
    %78 = arith.cmpi eq, %23, %77 : vector<16x16xi32>
    %79 = vector.broadcast %72 : i32 to vector<16x16xi32>
    %80 = arith.select %78, %79, %71 : vector<16x16xi1>, vector<16x16xi32>
    %c6 = arith.constant 6 : index
    %81 = memref.load %arg3[%c6] : memref<16xi32, #tpu.memory_space<smem>>
    %c6_i32 = arith.constant 6 : i32
    %82 = vector.broadcast %c6_i32 : i32 to vector<16x16xi32>
    %83 = arith.cmpi eq, %22, %82 : vector<16x16xi32>
    %84 = vector.broadcast %81 : i32 to vector<16x16xi32>
    %85 = arith.select %83, %84, %76 : vector<16x16xi1>, vector<16x16xi32>
    %c6_i32_20 = arith.constant 6 : i32
    %86 = vector.broadcast %c6_i32_20 : i32 to vector<16x16xi32>
    %87 = arith.cmpi eq, %23, %86 : vector<16x16xi32>
    %88 = vector.broadcast %81 : i32 to vector<16x16xi32>
    %89 = arith.select %87, %88, %80 : vector<16x16xi1>, vector<16x16xi32>
    %c7 = arith.constant 7 : index
    %90 = memref.load %arg3[%c7] : memref<16xi32, #tpu.memory_space<smem>>
    %c7_i32 = arith.constant 7 : i32
    %91 = vector.broadcast %c7_i32 : i32 to vector<16x16xi32>
    %92 = arith.cmpi eq, %22, %91 : vector<16x16xi32>
    %93 = vector.broadcast %90 : i32 to vector<16x16xi32>
    %94 = arith.select %92, %93, %85 : vector<16x16xi1>, vector<16x16xi32>
    %c7_i32_21 = arith.constant 7 : i32
    %95 = vector.broadcast %c7_i32_21 : i32 to vector<16x16xi32>
    %96 = arith.cmpi eq, %23, %95 : vector<16x16xi32>
    %97 = vector.broadcast %90 : i32 to vector<16x16xi32>
    %98 = arith.select %96, %97, %89 : vector<16x16xi1>, vector<16x16xi32>
    %c8 = arith.constant 8 : index
    %99 = memref.load %arg3[%c8] : memref<16xi32, #tpu.memory_space<smem>>
    %c8_i32 = arith.constant 8 : i32
    %100 = vector.broadcast %c8_i32 : i32 to vector<16x16xi32>
    %101 = arith.cmpi eq, %22, %100 : vector<16x16xi32>
    %102 = vector.broadcast %99 : i32 to vector<16x16xi32>
    %103 = arith.select %101, %102, %94 : vector<16x16xi1>, vector<16x16xi32>
    %c8_i32_22 = arith.constant 8 : i32
    %104 = vector.broadcast %c8_i32_22 : i32 to vector<16x16xi32>
    %105 = arith.cmpi eq, %23, %104 : vector<16x16xi32>
    %106 = vector.broadcast %99 : i32 to vector<16x16xi32>
    %107 = arith.select %105, %106, %98 : vector<16x16xi1>, vector<16x16xi32>
    %c9 = arith.constant 9 : index
    %108 = memref.load %arg3[%c9] : memref<16xi32, #tpu.memory_space<smem>>
    %c9_i32 = arith.constant 9 : i32
    %109 = vector.broadcast %c9_i32 : i32 to vector<16x16xi32>
    %110 = arith.cmpi eq, %22, %109 : vector<16x16xi32>
    %111 = vector.broadcast %108 : i32 to vector<16x16xi32>
    %112 = arith.select %110, %111, %103 : vector<16x16xi1>, vector<16x16xi32>
    %c9_i32_23 = arith.constant 9 : i32
    %113 = vector.broadcast %c9_i32_23 : i32 to vector<16x16xi32>
    %114 = arith.cmpi eq, %23, %113 : vector<16x16xi32>
    %115 = vector.broadcast %108 : i32 to vector<16x16xi32>
    %116 = arith.select %114, %115, %107 : vector<16x16xi1>, vector<16x16xi32>
    %c10 = arith.constant 10 : index
    %117 = memref.load %arg3[%c10] : memref<16xi32, #tpu.memory_space<smem>>
    %c10_i32 = arith.constant 10 : i32
    %118 = vector.broadcast %c10_i32 : i32 to vector<16x16xi32>
    %119 = arith.cmpi eq, %22, %118 : vector<16x16xi32>
    %120 = vector.broadcast %117 : i32 to vector<16x16xi32>
    %121 = arith.select %119, %120, %112 : vector<16x16xi1>, vector<16x16xi32>
    %c10_i32_24 = arith.constant 10 : i32
    %122 = vector.broadcast %c10_i32_24 : i32 to vector<16x16xi32>
    %123 = arith.cmpi eq, %23, %122 : vector<16x16xi32>
    %124 = vector.broadcast %117 : i32 to vector<16x16xi32>
    %125 = arith.select %123, %124, %116 : vector<16x16xi1>, vector<16x16xi32>
    %c11 = arith.constant 11 : index
    %126 = memref.load %arg3[%c11] : memref<16xi32, #tpu.memory_space<smem>>
    %c11_i32 = arith.constant 11 : i32
    %127 = vector.broadcast %c11_i32 : i32 to vector<16x16xi32>
    %128 = arith.cmpi eq, %22, %127 : vector<16x16xi32>
    %129 = vector.broadcast %126 : i32 to vector<16x16xi32>
    %130 = arith.select %128, %129, %121 : vector<16x16xi1>, vector<16x16xi32>
    %c11_i32_25 = arith.constant 11 : i32
    %131 = vector.broadcast %c11_i32_25 : i32 to vector<16x16xi32>
    %132 = arith.cmpi eq, %23, %131 : vector<16x16xi32>
    %133 = vector.broadcast %126 : i32 to vector<16x16xi32>
    %134 = arith.select %132, %133, %125 : vector<16x16xi1>, vector<16x16xi32>
    %c12 = arith.constant 12 : index
    %135 = memref.load %arg3[%c12] : memref<16xi32, #tpu.memory_space<smem>>
    %c12_i32 = arith.constant 12 : i32
    %136 = vector.broadcast %c12_i32 : i32 to vector<16x16xi32>
    %137 = arith.cmpi eq, %22, %136 : vector<16x16xi32>
    %138 = vector.broadcast %135 : i32 to vector<16x16xi32>
    %139 = arith.select %137, %138, %130 : vector<16x16xi1>, vector<16x16xi32>
    %c12_i32_26 = arith.constant 12 : i32
    %140 = vector.broadcast %c12_i32_26 : i32 to vector<16x16xi32>
    %141 = arith.cmpi eq, %23, %140 : vector<16x16xi32>
    %142 = vector.broadcast %135 : i32 to vector<16x16xi32>
    %143 = arith.select %141, %142, %134 : vector<16x16xi1>, vector<16x16xi32>
    %c13 = arith.constant 13 : index
    %144 = memref.load %arg3[%c13] : memref<16xi32, #tpu.memory_space<smem>>
    %c13_i32 = arith.constant 13 : i32
    %145 = vector.broadcast %c13_i32 : i32 to vector<16x16xi32>
    %146 = arith.cmpi eq, %22, %145 : vector<16x16xi32>
    %147 = vector.broadcast %144 : i32 to vector<16x16xi32>
    %148 = arith.select %146, %147, %139 : vector<16x16xi1>, vector<16x16xi32>
    %c13_i32_27 = arith.constant 13 : i32
    %149 = vector.broadcast %c13_i32_27 : i32 to vector<16x16xi32>
    %150 = arith.cmpi eq, %23, %149 : vector<16x16xi32>
    %151 = vector.broadcast %144 : i32 to vector<16x16xi32>
    %152 = arith.select %150, %151, %143 : vector<16x16xi1>, vector<16x16xi32>
    %c14 = arith.constant 14 : index
    %153 = memref.load %arg3[%c14] : memref<16xi32, #tpu.memory_space<smem>>
    %c14_i32 = arith.constant 14 : i32
    %154 = vector.broadcast %c14_i32 : i32 to vector<16x16xi32>
    %155 = arith.cmpi eq, %22, %154 : vector<16x16xi32>
    %156 = vector.broadcast %153 : i32 to vector<16x16xi32>
    %157 = arith.select %155, %156, %148 : vector<16x16xi1>, vector<16x16xi32>
    %c14_i32_28 = arith.constant 14 : i32
    %158 = vector.broadcast %c14_i32_28 : i32 to vector<16x16xi32>
    %159 = arith.cmpi eq, %23, %158 : vector<16x16xi32>
    %160 = vector.broadcast %153 : i32 to vector<16x16xi32>
    %161 = arith.select %159, %160, %152 : vector<16x16xi1>, vector<16x16xi32>
    %c15 = arith.constant 15 : index
    %162 = memref.load %arg3[%c15] : memref<16xi32, #tpu.memory_space<smem>>
    %c15_i32 = arith.constant 15 : i32
    %163 = vector.broadcast %c15_i32 : i32 to vector<16x16xi32>
    %164 = arith.cmpi eq, %22, %163 : vector<16x16xi32>
    %165 = vector.broadcast %162 : i32 to vector<16x16xi32>
    %166 = arith.select %164, %165, %157 : vector<16x16xi1>, vector<16x16xi32>
    %c15_i32_29 = arith.constant 15 : i32
    %167 = vector.broadcast %c15_i32_29 : i32 to vector<16x16xi32>
    %168 = arith.cmpi eq, %23, %167 : vector<16x16xi32>
    %169 = vector.broadcast %162 : i32 to vector<16x16xi32>
    %170 = arith.select %168, %169, %161 : vector<16x16xi1>, vector<16x16xi32>
    %171 = arith.cmpi eq, %166, %170 : vector<16x16xi32>
    %cst_30 = arith.constant dense<true> : vector<16x16xi1>
    %172 = arith.xori %24, %cst_30 : vector<16x16xi1>
    %173 = arith.andi %171, %172 : vector<16x16xi1>
    %cst_31 = arith.constant dense<true> : vector<16x16xi1>
    %174 = arith.xori %171, %cst_31 : vector<16x16xi1>
    %cst_32 = arith.constant 1.000000e+30 : f32
    %175 = vector.broadcast %cst_32 : f32 to vector<16x16xf32>
    %176 = arith.select %174, %21, %175 : vector<16x16xi1>, vector<16x16xf32>
    %cst_33 = arith.constant dense<0x7F800000> : vector<16xf32>
    %177 = vector.multi_reduction <minimumf>, %176, %cst_33 [1] : vector<16x16xf32> to vector<16xf32>
    %178 = vector.shape_cast %177 : vector<16xf32> to vector<16x1xf32>
    %cst_34 = arith.constant 0.000000e+00 : f32
    %cst_35 = arith.constant 1.000000e+30 : f32
    %179 = arith.subf %cst_34, %cst_35 : f32
    %180 = vector.broadcast %179 : f32 to vector<16x16xf32>
    %181 = arith.select %173, %21, %180 : vector<16x16xi1>, vector<16x16xf32>
    %cst_36 = arith.constant dense<0xFF800000> : vector<16xf32>
    %182 = vector.multi_reduction <maximumf>, %181, %cst_36 [1] : vector<16x16xf32> to vector<16xf32>
    %183 = vector.shape_cast %182 : vector<16xf32> to vector<16x1xf32>
    %cst_37 = arith.constant 1.000000e+00 : f32
    %cst_38 = arith.constant 0.000000e+00 : f32
    %184 = vector.broadcast %cst_37 : f32 to vector<16x16xf32>
    %185 = vector.broadcast %cst_38 : f32 to vector<16x16xf32>
    %186 = arith.select %174, %184, %185 : vector<16x16xi1>, vector<16x16xf32>
    %cst_39 = arith.constant dense<0.000000e+00> : vector<16xf32>
    %187 = vector.multi_reduction <add>, %186, %cst_39 [1] : vector<16x16xf32> to vector<16xf32>
    %188 = vector.shape_cast %187 : vector<16xf32> to vector<16x1xf32>
    %cst_40 = arith.constant 0.000000e+00 : f32
    %189 = vector.broadcast %cst_40 : f32 to vector<16x1xf32>
    %190 = arith.cmpf ogt, %188, %189 : vector<16x1xf32>
    %cst_41 = arith.constant 1.000000e+00 : f32
    %cst_42 = arith.constant 0.000000e+00 : f32
    %191 = vector.broadcast %cst_41 : f32 to vector<16x16xf32>
    %192 = vector.broadcast %cst_42 : f32 to vector<16x16xf32>
    %193 = arith.select %173, %191, %192 : vector<16x16xi1>, vector<16x16xf32>
    %cst_43 = arith.constant dense<0.000000e+00> : vector<16xf32>
    %194 = vector.multi_reduction <add>, %193, %cst_43 [1] : vector<16x16xf32> to vector<16xf32>
    %195 = vector.shape_cast %194 : vector<16xf32> to vector<16x1xf32>
    %cst_44 = arith.constant 0.000000e+00 : f32
    %196 = vector.broadcast %cst_44 : f32 to vector<16x1xf32>
    %197 = arith.cmpf ogt, %195, %196 : vector<16x1xf32>
    %198 = vector.broadcast %190 : vector<16x1xi1> to vector<16x16xi1>
    %199 = arith.andi %173, %198 : vector<16x16xi1>
    %cst_45 = arith.constant 2.000000e-01 : f32
    %200 = vector.broadcast %cst_45 : f32 to vector<16x16xf32>
    %201 = arith.addf %21, %200 : vector<16x16xf32>
    %202 = vector.broadcast %178 : vector<16x1xf32> to vector<16x16xf32>
    %203 = arith.cmpf ole, %202, %201 : vector<16x16xf32>
    %204 = arith.andi %199, %203 : vector<16x16xi1>
    %205 = vector.broadcast %197 : vector<16x1xi1> to vector<16x16xi1>
    %206 = arith.andi %174, %205 : vector<16x16xi1>
    %cst_46 = arith.constant 2.000000e-01 : f32
    %207 = vector.broadcast %cst_46 : f32 to vector<16x1xf32>
    %208 = arith.addf %183, %207 : vector<16x1xf32>
    %209 = vector.broadcast %208 : vector<16x1xf32> to vector<16x16xf32>
    %210 = arith.cmpf ole, %21, %209 : vector<16x16xf32>
    %211 = arith.andi %206, %210 : vector<16x16xi1>
    %cst_47 = arith.constant 5.000000e-01 : f32
    %212 = vector.broadcast %cst_47 : f32 to vector<16x16xf32>
    %213 = arith.subf %212, %14 : vector<16x16xf32>
    %cst_48 = arith.constant 1.000000e+00 : f32
    %214 = vector.broadcast %cst_48 : f32 to vector<16x16xf32>
    %215 = arith.mulf %214, %213 : vector<16x16xf32>
    %216 = math.exp %215 : vector<16x16xf32>
    %cst_49 = arith.constant 0.000000e+00 : f32
    %217 = vector.broadcast %cst_49 : f32 to vector<16x16xf32>
    %218 = arith.select %204, %216, %217 : vector<16x16xi1>, vector<16x16xf32>
    %cst_50 = arith.constant dense<0.000000e+00> : vector<16xf32>
    %219 = vector.multi_reduction <add>, %218, %cst_50 [1] : vector<16x16xf32> to vector<16xf32>
    %220 = vector.shape_cast %219 : vector<16xf32> to vector<16x1xf32>
    %cst_51 = arith.constant 5.000000e-01 : f32
    %221 = vector.broadcast %cst_51 : f32 to vector<16x16xf32>
    %222 = arith.subf %14, %221 : vector<16x16xf32>
    %cst_52 = arith.constant 6.000000e+01 : f32
    %223 = vector.broadcast %cst_52 : f32 to vector<16x16xf32>
    %224 = arith.mulf %223, %222 : vector<16x16xf32>
    %225 = math.exp %224 : vector<16x16xf32>
    %cst_53 = arith.constant 0.000000e+00 : f32
    %226 = vector.broadcast %cst_53 : f32 to vector<16x16xf32>
    %227 = arith.select %211, %225, %226 : vector<16x16xi1>, vector<16x16xf32>
    %cst_54 = arith.constant dense<0.000000e+00> : vector<16xf32>
    %228 = vector.multi_reduction <add>, %227, %cst_54 [1] : vector<16x16xf32> to vector<16xf32>
    %229 = vector.shape_cast %228 : vector<16xf32> to vector<16x1xf32>
    %cst_55 = arith.constant 1.000000e+00 : f32
    %230 = vector.broadcast %cst_55 : f32 to vector<16x1xf32>
    %231 = arith.addf %230, %220 : vector<16x1xf32>
    %232 = math.log %231 : vector<16x1xf32>
    %cst_56 = arith.constant 1.000000e+00 : f32
    %233 = vector.broadcast %cst_56 : f32 to vector<16x1xf32>
    %234 = arith.mulf %233, %232 : vector<16x1xf32>
    %cst_57 = arith.constant 1.000000e+00 : f32
    %235 = vector.broadcast %cst_57 : f32 to vector<16x1xf32>
    %236 = arith.addf %235, %229 : vector<16x1xf32>
    %237 = math.log %236 : vector<16x1xf32>
    %cst_58 = arith.constant 0.0166666675 : f32
    %238 = vector.broadcast %cst_58 : f32 to vector<16x1xf32>
    %239 = arith.mulf %238, %237 : vector<16x1xf32>
    %240 = arith.addf %234, %239 : vector<16x1xf32>
    %241 = vector.shape_cast %240 : vector<16x1xf32> to vector<1x16x1xf32>
    %cst_59 = arith.constant dense<0.000000e+00> : vector<1xf32>
    %242 = vector.multi_reduction <add>, %241, %cst_59 [1, 2] : vector<1x16x1xf32> to vector<1xf32>
    %243 = vector.shape_cast %242 : vector<1xf32> to vector<1x1x1xf32>
    %244 = vector.extract %243[0, 0, 0] : f32 from vector<1x1x1xf32>
    %cst_60 = arith.constant 1.600000e+01 : f32
    %245 = arith.divf %244, %cst_60 : f32
    %c0_61 = arith.constant 0 : index
    %246 = memref.load %arg4[%c0_61] : memref<1xf32, #tpu.memory_space<smem>>
    memref.store %245, %arg4[%c0_61] : memref<1xf32, #tpu.memory_space<smem>>
    return
  }
}

</mosaic_0001>

<llo_original>
// kernel: sap_metric_learning_forward.1
$region0: #{sap_metric_learning_forward.1}
  #allocation0 [shape = 'u32[]', space=smem, size = 0x4, offset = 0x4, fixed_abs, tag = 'smem constant byte address 0x4 - core index']
  #allocation1 [shape = 'u32[72,128]{1,0:T(1,128)}', space=vmem, size = 0x9000, scoped, tag = 'internal scratch']
  %s0 = inlined_call_operand.vmem [shape: f32[16,32], index: 0, kind: input, shape index: {}]
  %s1 = inlined_call_operand.hbm [shape: f32[32,32], index: 1, kind: input, shape index: {}]
  %s2 = inlined_call_operand.vmem [shape: f32[1,32], index: 2, kind: input, shape index: {}]
  %s3 = inlined_call_operand.vmem [shape: s32[16], index: 3, kind: input, shape index: {}]
  %s4 = inlined_call_operand.hbm [shape: f32[1], index: 4, kind: output, shape index: {}]
  %s5 = sld [smem:[#allocation0]]
  $region34: #{sap_metric_learning_forward.1} parent=0
    _
  %s7 = ssub.s32 1, %s5
  %s8 = scalar_select 0, %s7, %s5
  $region1: #{sap_metric_learning_forward.1} parent=0
    #allocation2 [shape = 'u8[16384]{0}', space=vmem, size = 0x4000, scoped, tag = 'input window, operand 1, single buffered']
    #allocation3 [shape = 's32[1]{0}', space=sflag, size = 0x4, scoped, tag = 'scoped memory for sap_metric_learning_forward.1']
    #allocation4 [shape = 's32[1]{0}', space=sflag, size = 0x4, scoped, tag = 'scoped memory for sap_metric_learning_forward.1']
    #allocation5 [shape = 's32[1]{0}', space=sflag, size = 0x4, scoped, tag = 'scoped memory for sap_metric_learning_forward.1']
    #allocation6 [shape = 'u8[512]{0}', space=smem, size = 0x200, scoped, tag = 'input window, operand 3, single buffered']
    #allocation7 [shape = 'u8[512]{0}', space=smem, size = 0x200, scoped, tag = 'output window, operand 0, single buffered']
    %9 = vsyncpa [#allocation3], 0
    %10 = vsyncpa [#allocation5], 0
    %11 = vsyncpa [#allocation4], 0
    // Predicated region
    $region2: #{sap_metric_learning_forward.1} parent=1 // pred_check
      _
    $region3: #{sap_metric_learning_forward.1} parent=1 // pred_check_branch
      %13 = sbr.rel (0) target = $region5
    $region4: #{sap_metric_learning_forward.1} parent=1 // pred_region
      _
    $region5: #{sap_metric_learning_forward.1} parent=1 // pred_fallthru
      _
    // Predicated region
    $region6: #{sap_metric_learning_forward.1} parent=1 // pred_check
      _
    $region7: #{sap_metric_learning_forward.1} parent=1 // pred_check_branch
      %15 = sbr.rel (0) target = $region9
    $region8: #{sap_metric_learning_forward.1} parent=1 // pred_region
      %17 = vsyncadd [#allocation3], 0
      %s18 = sshll.u32 %s1, 4
      %s19 = int_to_ptr.hbm [resolvable:$true] %s18
      %s20 = sshll.u32 [#allocation2], 4
      %s21 = int_to_ptr.vmem [resolvable:$true] %s20
      %26 = dma.hbm_to_vmem [thread:$0]  %s19, 512, %s21, [#allocation3], 128, 128, 8
    $region9: #{sap_metric_learning_forward.1} parent=1 // pred_fallthru
      _
    // Predicated region
    $region10: #{sap_metric_learning_forward.1} parent=1 // pred_check
      _
    $region11: #{sap_metric_learning_forward.1} parent=1 // pred_check_branch
      %28 = sbr.rel (0) target = $region13
    $region12: #{sap_metric_learning_forward.1} parent=1 // pred_region
      _
    $region13: #{sap_metric_learning_forward.1} parent=1 // pred_fallthru
      _
    // Predicated region
    $region14: #{sap_metric_learning_forward.1} parent=1 // pred_check
      _
    $region15: #{sap_metric_learning_forward.1} parent=1 // pred_check_branch
      %30 = sbr.rel (0) target = $region17
    $region16: #{sap_metric_learning_forward.1} parent=1 // pred_region
      %32 = vsyncadd [#allocation5], 0
      %s34 = sshll.u32 %s3, 4
      %s35 = int_to_ptr.vmem [resolvable:$true] %s34
      %37 = dma.vmem_to_smem %s35, 16, [#allocation6], [#allocation5]
    $region17: #{sap_metric_learning_forward.1} parent=1 // pred_fallthru
      _
    // Predicated region
    $region18: #{sap_metric_learning_forward.1} parent=1 // pred_check
      _
    $region19: #{sap_metric_learning_forward.1} parent=1 // pred_check_branch
      %39 = sbr.rel (0) target = $region21
    $region20: #{sap_metric_learning_forward.1} parent=1 // pred_region
      %41 = dma.done [#allocation3], 512
    $region21: #{sap_metric_learning_forward.1} parent=1 // pred_fallthru
      _
    // Predicated region
    $region22: #{sap_metric_learning_forward.1} parent=1 // pred_check
      _
    $region23: #{sap_metric_learning_forward.1} parent=1 // pred_check_branch
      %43 = sbr.rel (0) target = $region25
    $region24: #{sap_metric_learning_forward.1} parent=1 // pred_region
      %45 = dma.done [#allocation5], 16
    $region25: #{sap_metric_learning_forward.1} parent=1 // pred_fallthru
      _
    %46 = sfence
    %v47 = vld [vmem:[%s0] sm:$0xff]
    %v48 = vld [vmem:[%s0 + $0x8] sm:$0xff]
    %v49 = vld [vmem:[#allocation2] sm:$0xff]
    %v50 = vld [vmem:[#allocation2 + $0x8] sm:$0xff]
    %v51 = vld [vmem:[#allocation2 + $0x10] sm:$0xff]
    %v52 = vld [vmem:[#allocation2 + $0x18] sm:$0xff]
    %v53 = vld [vmem:[%s2] sm:$0x1]
    %v55 = vperm.slane %v53, 0
    %vm57 = vcmask 261120
    %v59 = vsel %vm57, %v47, 0
    %v62 = vsel %vm57, %v48, 0
    %64 = vmatpush.msra.mxu0 0.0
    %65 = vmatpush.msra.mxu0 0.0
    %66 = vmatpush.msra.mxu0 0.0
    %67 = vmatpush.msra.mxu0 0.0
    %68 = vmatpush.msra.mxu0 0.0
    %69 = vmatpush.msra.mxu0 0.0
    %70 = vmatpush.msra.mxu0 0.0
    %71 = vmatpush.msra.mxu0 0.0
    %72 = vmatpush.msra.mxu0 0.0
    %73 = vmatpush.msra.mxu0 0.0
    %74 = vmatpush.msra.mxu0 0.0
    %75 = vmatpush.msra.mxu0 0.0
    %76 = vmatpush.msra.mxu0 %v52
    %77 = vmatpush.msra.mxu0 %v51
    %78 = vmatpush.msra.mxu0 %v50
    %79 = vmatpush.msra.mxu0 %v49
    %80 = vmatmul.f32.gmra.mxu0 %v59
    %v81 = vpop.f32.mrf.mxu0
    %v82 = vadd.f32 %v55, %v81
    %83 = vmatmul.f32.gmra.mxu0 %v62
    %v84 = vpop.f32.mrf.mxu0
    %v85 = vadd.f32 %v55, %v84
    %86 = vdwg.mxu0
    %v87 = vmul.f32 %v82, %v82
    %v88 = vmul.f32 %v85, %v85
    %v89 = vsel %vm57, %v87, 0.0
    %90 = vadd.xlane.f32.xlu0 %v89
    %v91 = vpop.xlane.xlu0 %90
    %v92 = vsel %vm57, %v88, 0.0
    %93 = vadd.xlane.f32.xlu0 %v92
    %v94 = vpop.xlane.xlu0 %93
    %v95 = vadd.f32 %v91, 1e-24
    %v96 = vadd.f32 %v94, 1e-24
    %v97 = vrsqrt.pop %v95
    %v98 = vmul.f32 %v97, %v95
    %v99 = vmul.f32 %v98, %v97
    %v100 = vmul.f32 0.5, %v99
    %v101 = vsub.f32 1.5, %v100
    %v102 = vmul.f32 %v97, %v101
    %vm103 = vweird.f32 %v95
    %vm104 = vweird.f32 %v97
    %vm105 = vmor %vm103, %vm104
    %v106 = vsel %vm105, %v97, %v102
    %v107 = vrsqrt.pop %v96
    %v108 = vmul.f32 %v107, %v96
    %v109 = vmul.f32 %v108, %v107
    %v110 = vmul.f32 0.5, %v109
    %v111 = vsub.f32 1.5, %v110
    %v112 = vmul.f32 %v107, %v111
    %vm113 = vweird.f32 %v96
    %vm114 = vweird.f32 %v107
    %vm115 = vmor %vm113, %vm114
    %v116 = vsel %vm115, %v107, %v112
    %v117 = vmul.f32 %v82, %v106
    %v118 = vmul.f32 %v85, %v116
    %v120 = vsel %vm57, %v117, 0
    %v123 = vsel %vm57, %v118, 0
    %125 = vmatpush.xpose.msra.mxu0 0.0
    %126 = vmatpush.xpose.msra.mxu0 0.0
    %127 = vmatpush.xpose.msra.mxu0 0.0
    %128 = vmatpush.xpose.msra.mxu0 0.0
    %129 = vmatpush.xpose.msra.mxu0 0.0
    %130 = vmatpush.xpose.msra.mxu0 0.0
    %131 = vmatpush.xpose.msra.mxu0 0.0
    %132 = vmatpush.xpose.msra.mxu0 0.0
    %133 = vmatpush.xpose.msra.mxu0 0.0
    %134 = vmatpush.xpose.msra.mxu0 0.0
    %135 = vmatpush.xpose.msra.mxu0 0.0
    %136 = vmatpush.xpose.msra.mxu0 0.0
    %137 = vmatpush.xpose.msra.mxu0 0.0
    %138 = vmatpush.xpose.msra.mxu0 0.0
    %139 = vmatpush.xpose.msra.mxu0 %v123
    %140 = vmatpush.xpose.msra.mxu0 %v120
    %141 = vmatmul.f32.gmra.mxu0 %v120
    %v142 = vpop.f32.mrf.mxu0
    %v143 = vadd.f32 0.0, %v142
    %144 = vmatmul.f32.gmra.mxu0 %v123
    %v145 = vpop.f32.mrf.mxu0
    %v146 = vadd.f32 0.0, %v145
    %147 = vdwg.mxu0
    %v148 = vmul.f32 %v143, 2.0
    %v149 = vmul.f32 %v146, 2.0
    %v150 = vsub.f32 2.0, %v148
    %v151 = vsub.f32 2.0, %v149
    %v152 = vmax.f32 %v150, 0.0
    %v153 = vmax.f32 %v151, 0.0
    %v154 = vrsqrt.pop %v152
    %v155 = vmul.f32 %v154, %v152
    %v156 = vmul.f32 %v155, %v154
    %v157 = vmul.f32 0.5, %v156
    %v158 = vsub.f32 1.5, %v157
    %v159 = vmul.f32 %v154, %v158
    %v160 = vmul.f32 %v152, %v159
    %vm161 = vcmp.eq.f32.partialorder %v152, inf
    %v162 = vsel %vm161, %v152, %v160
    %vm163 = vcmp.eq.f32.partialorder %v152, 0.0
    %v164 = vand.u32 %v152, 2147483648
    %v165 = vsel %vm163, %v164, %v162
    %v166 = vrsqrt.pop %v153
    %v167 = vmul.f32 %v166, %v153
    %v168 = vmul.f32 %v167, %v166
    %v169 = vmul.f32 0.5, %v168
    %v170 = vsub.f32 1.5, %v169
    %v171 = vmul.f32 %v166, %v170
    %v172 = vmul.f32 %v153, %v171
    %vm173 = vcmp.eq.f32.partialorder %v153, inf
    %v174 = vsel %vm173, %v153, %v172
    %vm175 = vcmp.eq.f32.partialorder %v153, 0.0
    %v176 = vand.u32 %v153, 2147483648
    %v177 = vsel %vm175, %v176, %v174
    %v178 = vlaneseq
    %v179 = vshrl.u32 %v178, 7
    %v180 = vadd.s32 %v179, 8
    %v181 = vlaneseq
    %v182 = vand.u32 %v181, 127
    %vm183 = vcmp.eq.s32.totalorder %v179, %v182
    %vm184 = vcmp.eq.s32.totalorder %v180, %v182
    %s185 = sld [smem:[#allocation6]]
    %vm186 = vcmp.eq.s32.totalorder %v179, 0
    %vm187 = vcmp.eq.s32.totalorder %v180, 0
    %v188 = vstv %s185
    %v189 = vsel %vm186, %v188, 0
    %v190 = vsel %vm187, %v188, 0
    %vm191 = vcmp.eq.s32.totalorder %v182, 0
    %v192 = vsel %vm191, %v188, 0
    %s193 = sld [smem:[#allocation6 + $0x1]]
    %vm194 = vcmp.eq.s32.totalorder %v179, 1
    %vm195 = vcmp.eq.s32.totalorder %v180, 1
    %v196 = vstv %s193
    %v197 = vsel %vm194, %v196, %v189
    %v198 = vsel %vm195, %v196, %v190
    %vm199 = vcmp.eq.s32.totalorder %v182, 1
    %v200 = vsel %vm199, %v196, %v192
    %s201 = sld [smem:[#allocation6 + $0x2]]
    %vm202 = vcmp.eq.s32.totalorder %v179, 2
    %vm203 = vcmp.eq.s32.totalorder %v180, 2
    %v204 = vstv %s201
    %v205 = vsel %vm202, %v204, %v197
    %v206 = vsel %vm203, %v204, %v198
    %vm207 = vcmp.eq.s32.totalorder %v182, 2
    %v208 = vsel %vm207, %v204, %v200
    %s209 = sld [smem:[#allocation6 + $0x3]]
    %vm210 = vcmp.eq.s32.totalorder %v179, 3
    %vm211 = vcmp.eq.s32.totalorder %v180, 3
    %v212 = vstv %s209
    %v213 = vsel %vm210, %v212, %v205
    %v214 = vsel %vm211, %v212, %v206
    %vm215 = vcmp.eq.s32.totalorder %v182, 3
    %v216 = vsel %vm215, %v212, %v208
    %s217 = sld [smem:[#allocation6 + $0x4]]
    %vm218 = vcmp.eq.s32.totalorder %v179, 4
    %vm219 = vcmp.eq.s32.totalorder %v180, 4
    %v220 = vstv %s217
    %v221 = vsel %vm218, %v220, %v213
    %v222 = vsel %vm219, %v220, %v214
    %vm223 = vcmp.eq.s32.totalorder %v182, 4
    %v224 = vsel %vm223, %v220, %v216
    %s225 = sld [smem:[#allocation6 + $0x5]]
    %vm226 = vcmp.eq.s32.totalorder %v179, 5
    %vm227 = vcmp.eq.s32.totalorder %v180, 5
    %v228 = vstv %s225
    %v229 = vsel %vm226, %v228, %v221
    %v230 = vsel %vm227, %v228, %v222
    %vm231 = vcmp.eq.s32.totalorder %v182, 5
    %v232 = vsel %vm231, %v228, %v224
    %s233 = sld [smem:[#allocation6 + $0x6]]
    %vm234 = vcmp.eq.s32.totalorder %v179, 6
    %vm235 = vcmp.eq.s32.totalorder %v180, 6
    %v236 = vstv %s233
    %v237 = vsel %vm234, %v236, %v229
    %v238 = vsel %vm235, %v236, %v230
    %vm239 = vcmp.eq.s32.totalorder %v182, 6
    %v240 = vsel %vm239, %v236, %v232
    %s241 = sld [smem:[#allocation6 + $0x7]]
    %vm242 = vcmp.eq.s32.totalorder %v179, 7
    %vm243 = vcmp.eq.s32.totalorder %v180, 7
    %v244 = vstv %s241
    %v245 = vsel %vm242, %v244, %v237
    %v246 = vsel %vm243, %v244, %v238
    %vm247 = vcmp.eq.s32.totalorder %v182, 7
    %v248 = vsel %vm247, %v244, %v240
    %s249 = sld [smem:[#allocation6 + $0x8]]
    %vm250 = vcmp.eq.s32.totalorder %v179, 8
    %vm251 = vcmp.eq.s32.totalorder %v180, 8
    %v252 = vstv %s249
    %v253 = vsel %vm250, %v252, %v245
    %v254 = vsel %vm251, %v252, %v246
    %vm255 = vcmp.eq.s32.totalorder %v182, 8
    %v256 = vsel %vm255, %v252, %v248
    %s257 = sld [smem:[#allocation6 + $0x9]]
    %vm258 = vcmp.eq.s32.totalorder %v179, 9
    %vm259 = vcmp.eq.s32.totalorder %v180, 9
    %v260 = vstv %s257
    %v261 = vsel %vm258, %v260, %v253
    %v262 = vsel %vm259, %v260, %v254
    %vm263 = vcmp.eq.s32.totalorder %v182, 9
    %v264 = vsel %vm263, %v260, %v256
    %s265 = sld [smem:[#allocation6 + $0xa]]
    %vm266 = vcmp.eq.s32.totalorder %v179, 10
    %vm267 = vcmp.eq.s32.totalorder %v180, 10
    %v268 = vstv %s265
    %v269 = vsel %vm266, %v268, %v261
    %v270 = vsel %vm267, %v268, %v262
    %vm271 = vcmp.eq.s32.totalorder %v182, 10
    %v272 = vsel %vm271, %v268, %v264
    %s273 = sld [smem:[#allocation6 + $0xb]]
    %vm274 = vcmp.eq.s32.totalorder %v179, 11
    %vm275 = vcmp.eq.s32.totalorder %v180, 11
    %v276 = vstv %s273
    %v277 = vsel %vm274, %v276, %v269
    %v278 = vsel %vm275, %v276, %v270
    %vm279 = vcmp.eq.s32.totalorder %v182, 11
    %v280 = vsel %vm279, %v276, %v272
    %s281 = sld [smem:[#allocation6 + $0xc]]
    %vm282 = vcmp.eq.s32.totalorder %v179, 12
    %vm283 = vcmp.eq.s32.totalorder %v180, 12
    %v284 = vstv %s281
    %v285 = vsel %vm282, %v284, %v277
    %v286 = vsel %vm283, %v284, %v278
    %vm287 = vcmp.eq.s32.totalorder %v182, 12
    %v288 = vsel %vm287, %v284, %v280
    %s289 = sld [smem:[#allocation6 + $0xd]]
    %vm290 = vcmp.eq.s32.totalorder %v179, 13
    %vm291 = vcmp.eq.s32.totalorder %v180, 13
    %v292 = vstv %s289
    %v293 = vsel %vm290, %v292, %v285
    %v294 = vsel %vm291, %v292, %v286
    %vm295 = vcmp.eq.s32.totalorder %v182, 13
    %v296 = vsel %vm295, %v292, %v288
    %s297 = sld [smem:[#allocation6 + $0xe]]
    %vm298 = vcmp.eq.s32.totalorder %v179, 14
    %vm299 = vcmp.eq.s32.totalorder %v180, 14
    %v300 = vstv %s297
    %v301 = vsel %vm298, %v300, %v293
    %v302 = vsel %vm299, %v300, %v294
    %vm303 = vcmp.eq.s32.totalorder %v182, 14
    %v304 = vsel %vm303, %v300, %v296
    %s305 = sld [smem:[#allocation6 + $0xf]]
    %vm306 = vcmp.eq.s32.totalorder %v179, 15
    %vm307 = vcmp.eq.s32.totalorder %v180, 15
    %v308 = vstv %s305
    %v309 = vsel %vm306, %v308, %v301
    %v310 = vsel %vm307, %v308, %v302
    %vm311 = vcmp.eq.s32.totalorder %v182, 15
    %v312 = vsel %vm311, %v308, %v304
    %vm313 = vcmp.eq.s32.totalorder %v309, %v312
    %vm314 = vcmp.eq.s32.totalorder %v310, %v312
    %vm315 = vmxor %vm183, 1
    %vm316 = vmxor %vm184, 1
    %vm317 = vmand %vm313, %vm315
    %vm318 = vmand %vm314, %vm316
    %vm319 = vmxor %vm313, 1
    %vm320 = vmxor %vm314, 1
    %v321 = vsel %vm319, %v165, 1e+30
    %v322 = vsel %vm320, %v177, 1e+30
    %vm323 = vcmask 130048
    %v324 = vsel %vm323, %v321, inf
    %325 = vmin.xlane.f32.xlu0 %v324
    %v326 = vpop.xlane.xlu0 %325
    %v327 = vsel %vm323, %v322, inf
    %328 = vmin.xlane.f32.xlu0 %v327
    %v329 = vpop.xlane.xlu0 %328
    %v330 = vsel %vm317, %v165, -1e+30
    %v331 = vsel %vm318, %v177, -1e+30
    %v332 = vsel %vm323, %v330, -inf
    %333 = vmax.xlane.f32.xlu0 %v332
    %v334 = vpop.xlane.xlu0 %333
    %v335 = vsel %vm323, %v331, -inf
    %336 = vmax.xlane.f32.xlu0 %v335
    %v337 = vpop.xlane.xlu0 %336
    %v338 = vsel %vm319, 1.0, 0.0
    %v339 = vsel %vm320, 1.0, 0.0
    %v340 = vsel %vm323, %v338, 0.0
    %341 = vadd.xlane.f32.xlu0 %v340
    %v342 = vpop.xlane.xlu0 %341
    %v343 = vsel %vm323, %v339, 0.0
    %344 = vadd.xlane.f32.xlu0 %v343
    %v345 = vpop.xlane.xlu0 %344
    %vm346 = vcmp.gt.f32.partialorder %v342, 0.0
    %vm347 = vcmp.gt.f32.partialorder %v345, 0.0
    %v348 = vsel %vm317, 1.0, 0.0
    %v349 = vsel %vm318, 1.0, 0.0
    %v350 = vsel %vm323, %v348, 0.0
    %351 = vadd.xlane.f32.xlu0 %v350
    %v352 = vpop.xlane.xlu0 %351
    %v353 = vsel %vm323, %v349, 0.0
    %354 = vadd.xlane.f32.xlu0 %v353
    %v355 = vpop.xlane.xlu0 %354
    %vm356 = vcmp.gt.f32.partialorder %v352, 0.0
    %vm357 = vcmp.gt.f32.partialorder %v355, 0.0
    %v358 = vsel %vm346, 1, 0
    %v359 = vsel %vm347, 1, 0
    %vm360 = vcmp.eq.s32.totalorder %v358, 1
    %vm361 = vcmp.eq.s32.totalorder %v359, 1
    %vm362 = vmand %vm317, %vm360
    %vm363 = vmand %vm318, %vm361
    %v364 = vadd.f32 %v165, 0.2
    %v365 = vadd.f32 %v177, 0.2
    %vm366 = vcmp.le.f32.partialorder %v326, %v364
    %vm367 = vcmp.le.f32.partialorder %v329, %v365
    %vm368 = vmand %vm362, %vm366
    %vm369 = vmand %vm363, %vm367
    %v370 = vsel %vm356, 1, 0
    %v371 = vsel %vm357, 1, 0
    %vm372 = vcmp.eq.s32.totalorder %v370, 1
    %vm373 = vcmp.eq.s32.totalorder %v371, 1
    %vm374 = vmand %vm319, %vm372
    %vm375 = vmand %vm320, %vm373
    %v376 = vadd.f32 %v334, 0.2
    %v377 = vadd.f32 %v337, 0.2
    %vm378 = vcmp.le.f32.partialorder %v165, %v376
    %vm379 = vcmp.le.f32.partialorder %v177, %v377
    %vm380 = vmand %vm374, %vm378
    %vm381 = vmand %vm375, %vm379
    %v382 = vsub.f32 0.5, %v143
    %v383 = vsub.f32 0.5, %v146
    %v384 = vmul.f32 %v382, 1.442695
    %v385 = vpow.pop %v384
    %v386 = vmul.f32 %v383, 1.442695
    %v387 = vpow.pop %v386
    %v388 = vsel %vm368, %v385, 0.0
    %v389 = vsel %vm369, %v387, 0.0
    %v390 = vsel %vm323, %v388, 0.0
    %391 = vadd.xlane.f32.xlu0 %v390
    %v392 = vpop.xlane.xlu0 %391
    %v393 = vsel %vm323, %v389, 0.0
    %394 = vadd.xlane.f32.xlu0 %v393
    %v395 = vpop.xlane.xlu0 %394
    %v396 = vsub.f32 %v143, 0.5
    %v397 = vsub.f32 %v146, 0.5
    %v398 = vmul.f32 %v396, 60.0
    %v399 = vmul.f32 %v397, 60.0
    %v400 = vmul.f32 %v398, 1.442695
    %v401 = vpow.pop %v400
    %v402 = vmul.f32 %v399, 1.442695
    %v403 = vpow.pop %v402
    %v404 = vsel %vm380, %v401, 0.0
    %v405 = vsel %vm381, %v403, 0.0
    %v406 = vsel %vm323, %v404, 0.0
    %407 = vadd.xlane.f32.xlu0 %v406
    %v408 = vpop.xlane.xlu0 %407
    %v409 = vsel %vm323, %v405, 0.0
    %410 = vadd.xlane.f32.xlu0 %v409
    %v411 = vpop.xlane.xlu0 %410
    %v412 = vadd.f32 %v392, 1.0
    %v413 = vadd.f32 %v395, 1.0
    %v414 = vlog2.pop %v412
    %v415 = vmul.f32 %v414, 0.6931472
    %v416 = vlog2.pop %v413
    %v417 = vmul.f32 %v416, 0.6931472
    %v418 = vadd.f32 %v408, 1.0
    %v419 = vadd.f32 %v411, 1.0
    %v420 = vlog2.pop %v418
    %v421 = vmul.f32 %v420, 0.6931472
    %v422 = vlog2.pop %v419
    %v423 = vmul.f32 %v422, 0.6931472
    %v424 = vmul.f32 %v421, 0.016666668
    %v425 = vmul.f32 %v423, 0.016666668
    %v426 = vadd.f32 %v415, %v424
    %v427 = vadd.f32 %v417, %v425
    %vm428 = vcmask 7168
    %v429 = vsel %vm428, %v426, 0.0
    %v430 = vsel %vm428, %v427, 0.0
    %v431 = vadd.f32 %v429, %v430
    %432 = vadd.xlane.f32.xlu0 %v431
    %v433 = vpop.xlane.xlu0 %432
    %v434 = vrot.slane %v433, 4
    %v435 = vadd.f32 %v433, %v434
    %v436 = vrot.slane %v435, 2
    %v437 = vadd.f32 %v435, %v436
    %v438 = vrot.slane %v437, 1
    %v439 = vadd.f32 %v437, %v438
    %s440 = vtos %v439
    %v441 = vrcp.pop 16.0
    %v442 = vmul.f32 16.0, %v441
    %v443 = vsub.f32 1.0, %v442
    %v444 = vmul.f32 %v441, %v443
    %v445 = vadd.f32 %v441, %v444
    %vm446 = vweird.f32 %v441
    %v447 = vsel %vm446, %v441, %v445
    %s448 = vtos %v447
    %s449 = smul.f32 %s440, %s448
    %s450 = scalar_lea.smem [#allocation7], 0
    %451 = sst [smem:[%s450]] %s449
    // Predicated region
    $region26: #{sap_metric_learning_forward.1} parent=1 // pred_check
      _
    $region27: #{sap_metric_learning_forward.1} parent=1 // pred_check_branch
      %453 = sbr.rel (0) target = $region29
    $region28: #{sap_metric_learning_forward.1} parent=1 // pred_region
      %455 = vsyncadd [#allocation4], 0
      %s457 = sshll.u32 %s4, 4
      %s458 = int_to_ptr.hbm [resolvable:$true] %s457
      %460 = dma.smem_to_hbm [#allocation7], 16, %s458, [#allocation4]
    $region29: #{sap_metric_learning_forward.1} parent=1 // pred_fallthru
      _
    // Predicated region
    $region30: #{sap_metric_learning_forward.1} parent=1 // pred_check
      _
    $region31: #{sap_metric_learning_forward.1} parent=1 // pred_check_branch
      %462 = sbr.rel (0) target = $region33
    $region32: #{sap_metric_learning_forward.1} parent=1 // pred_region
      %464 = dma.done [#allocation4], 16
    $region33: #{sap_metric_learning_forward.1} parent=1 // pred_fallthru
      _
    %465 = sfence
    %466 = vsyncpa [#allocation3], 1
    %467 = vsyncpa [#allocation4], 1
    %468 = vsyncpa [#allocation5], 1

</llo_original>
